<compile_context>
chip_gen: v7x
topology: tpu7x:2x2x1
jax: 0.10.0
libtpu: 0.0.40
codegen_flags: <defaults>
</compile_context>

<pallas_src>
import functools

import jax
import jax.numpy as jnp
from jax.experimental import pallas as pl
from jax.experimental.pallas import tpu as pltpu


def _proj_layernorm_kernel(x_ref, w_ref, b_ref, gamma_ref, beta_ref, o_ref, *,
                           tokens_per_step, d, eps):
    # x_ref:     (B, Din)            input dtype (cast to bf16 below, tiny)
    # w_ref:     (k, Din, D)  bf16   contiguous weight slab for k tokens
    # b_ref:     (k, 1, D)    f32    bias slices for these tokens
    # gamma_ref: (1, D)       f32    LayerNorm scale
    # beta_ref:  (1, D)       f32    LayerNorm shift
    # o_ref:     (B, k*D)            output slab for these k tokens
    x = x_ref[...].astype(w_ref.dtype)      # tiny cast, hidden under the W DMA
    gamma = gamma_ref[...]
    beta = beta_ref[...]
    inv_d = 1.0 / d
    for i in range(tokens_per_step):        # small static unroll
        # Projection on the MXU with f32 accumulation.
        y = jnp.dot(x, w_ref[i], preferred_element_type=jnp.float32)   # (B, D)
        y = y + b_ref[i]                                               # (1, D) bcast
        # LayerNorm over D: two-pass centered variance (no cancellation risk;
        # the extra VPU pass is free — the kernel is HBM-bound on W).
        mean = jnp.sum(y, axis=-1, keepdims=True) * inv_d
        c = y - mean
        var = jnp.sum(c * c, axis=-1, keepdims=True) * inv_d
        normed = c * jax.lax.rsqrt(var + eps)
        o_ref[:, i * d:(i + 1) * d] = (normed * gamma + beta).astype(o_ref.dtype)


def _choose_tokens_per_step(T, Din, D, B, out_bytes, *,
                            vmem_budget=20 << 20, target_dma_bytes=2 << 20):
    """How many tokens' worth of W to DMA per grid step."""
    w_tok = Din * D * 2                       # bf16 weight bytes per token

    def layout_ok(k):
        # The output block (B, k*D) is carved from (B, T*D): if k < T its last
        # dim must be a multiple of 128 lanes.
        return k == T or (k * D) % 128 == 0

    def footprint(k):
        return (2 * k * w_tok                 # double-buffered W slab
                + 2 * B * Din * 4             # x (resident; counted conservatively)
                + 2 * B * k * D * out_bytes   # output block
                + 2 * k * D * 4               # bias
                + 4 * D * 4)                  # gamma + beta

    divisors = [k for k in range(1, T + 1) if T % k == 0]
    feasible = [k for k in divisors if layout_ok(k) and footprint(k) <= vmem_budget]
    if not feasible:
        feasible = [k for k in divisors if layout_ok(k)] or [T]
    # Keep >= 4 grid steps when possible: 2 parallel steps per v7x TensorCore.
    pref = [k for k in feasible if T // k >= 4] or [feasible[0]]
    for k in pref:                            # smallest k reaching the target DMA size
        if k * w_tok >= target_dma_bytes:
            return k
    return pref[-1]                           # otherwise pack as much as allowed


def prepare_projection_params(w, b, gamma, beta, *, clip_extra_context_tokens,
                              cross_attention_dim, param_dtype=jnp.bfloat16):
    """One-time parameter prep (run at model-build time, NOT per forward call).

    w:     (T*D, Din)  torch nn.Linear weight layout (out_features, in_features)
    b:     (T*D,)      torch nn.Linear bias
    gamma: (D,)        LayerNorm weight
    beta:  (D,)        LayerNorm bias
    Returns (w_tokens, b_tokens, gamma2, beta2); w_tokens is a
    contiguous-per-token (T, Din, D) bf16 slab.
    """
    T = clip_extra_context_tokens
    D = cross_attention_dim
    TD, Din = w.shape
    assert TD == T * D, (w.shape, T, D)
    # y[b, t, d] = sum_i x[b, i] * W[t*D + d, i]  ->  w_tokens[t, i, d]
    w_tokens = jnp.swapaxes(w.reshape(T, D, Din), 1, 2).astype(param_dtype)
    b_tokens = b.reshape(T, 1, D).astype(jnp.float32)
    gamma2 = gamma.reshape(1, D).astype(jnp.float32)
    beta2 = beta.reshape(1, D).astype(jnp.float32)
    return w_tokens, b_tokens, gamma2, beta2


def projection_model(image_embeds, w_tokens, b_tokens, gamma2, beta2, *,
                     eps=1e-5, out_dtype=None):
    """Fused Linear + reshape + LayerNorm forward (hot path).

    image_embeds: (B, Din)
    w_tokens:     (T, Din, D) bf16  (from prepare_projection_params)
    b_tokens:     (T, 1, D) f32; gamma2/beta2: (1, D) f32
    returns:      (B, T, D)
    """
    B, Din = image_embeds.shape
    T, Din_w, D = w_tokens.shape
    assert Din_w == Din, (w_tokens.shape, image_embeds.shape)
    out_dtype = image_embeds.dtype if out_dtype is None else out_dtype
    out_bytes = jnp.dtype(out_dtype).itemsize

    k = _choose_tokens_per_step(T, Din, D, B, out_bytes)
    grid = (T // k,)

    kernel = functools.partial(_proj_layernorm_kernel,
                               tokens_per_step=k, d=D, eps=eps)

    w_bytes = w_tokens.size * w_tokens.dtype.itemsize
    cost = pl.CostEstimate(
        flops=2 * B * Din * T * D,
        transcendentals=B * T,                # one rsqrt per (batch, token)
        bytes_accessed=(image_embeds.size * image_embeds.dtype.itemsize
                        + w_bytes + (T * D + 2 * D) * 4
                        + B * T * D * out_bytes))

    # Explicit VMEM budget: double-buffered W slab + x + out block + params,
    # plus headroom — portable across v5e/v6e/v7x scoped-VMEM defaults.
    footprint = (2 * k * Din * D * w_tokens.dtype.itemsize
                 + 2 * B * Din * image_embeds.dtype.itemsize
                 + 2 * B * k * D * out_bytes
                 + 2 * k * D * 4 + 4 * D * 4)
    vmem_limit = int(min(max(footprint + (4 << 20), 16 << 20), 64 << 20))

    out2d = pl.pallas_call(
        kernel,
        out_shape=jax.ShapeDtypeStruct((B, T * D), out_dtype),
        grid_spec=pltpu.PrefetchScalarGridSpec(
            num_scalar_prefetch=0,
            grid=grid,
            in_specs=[
                pl.BlockSpec((B, Din), lambda t: (0, 0)),        # x: resident
                pl.BlockSpec((k, Din, D), lambda t: (t, 0, 0)),  # contiguous W slab
                pl.BlockSpec((k, 1, D), lambda t: (t, 0, 0)),    # bias slab
                pl.BlockSpec((1, D), lambda t: (0, 0)),          # gamma
                pl.BlockSpec((1, D), lambda t: (0, 0)),          # beta
            ],
            out_specs=pl.BlockSpec((B, k * D), lambda t: (0, t)),
        ),
        compiler_params=pltpu.CompilerParams(
            dimension_semantics=("parallel",),
            vmem_limit_bytes=vmem_limit),
        cost_estimate=cost,
    )(image_embeds, w_tokens, b_tokens, gamma2, beta2)

    # Free, contiguous reshape to the PyTorch output layout.
    return out2d.reshape(B, T, D)


if __name__ == "__main__":
    # Small shapes consistent with the module (scaled-down dims, 128-lane aligned).
    batch = 2
    clip_embeddings_dim = 128       # Din
    cross_attention_dim = 128       # D
    clip_extra_context_tokens = 4   # T

    key = jax.random.PRNGKey(0)
    k_x, k_w, k_b = jax.random.split(key, 3)

    x = jax.random.normal(k_x, (batch, clip_embeddings_dim), dtype=jnp.float32)
    # torch nn.Linear layout: weight (out_features, in_features), bias (out_features,)
    w = jax.random.normal(
        k_w, (clip_extra_context_tokens * cross_attention_dim,
              clip_embeddings_dim), dtype=jnp.float32) * 0.02
    b = jax.random.normal(
        k_b, (clip_extra_context_tokens * cross_attention_dim,),
        dtype=jnp.float32) * 0.01
    gamma = jnp.ones((cross_attention_dim,), dtype=jnp.float32)
    beta = jnp.zeros((cross_attention_dim,), dtype=jnp.float32)

    # One-time prep (bf16 cast + per-token contiguous relayout) — outside the hot path.
    w_t, b_t, g2, bt2 = prepare_projection_params(
        w, b, gamma, beta,
        clip_extra_context_tokens=clip_extra_context_tokens,
        cross_attention_dim=cross_attention_dim)

    apply_fn = jax.jit(projection_model)
    out = jax.block_until_ready(apply_fn(x, w_t, b_t, g2, bt2))

    # Pure-JAX reference using the same bf16-weights / f32-accumulation recipe.
    # (bf16 weights give ~2e-3-level parity with the pure-f32 PyTorch module.)
    x32 = x.astype(jnp.bfloat16).astype(jnp.float32)
    w32 = w.astype(jnp.bfloat16).astype(jnp.float32)
    y_ref = x32 @ w32.T + b
    y_ref = y_ref.reshape(-1, clip_extra_context_tokens, cross_attention_dim)
    mean = y_ref.mean(axis=-1, keepdims=True)
    var = ((y_ref - mean) ** 2).mean(axis=-1, keepdims=True)
    ref = (y_ref - mean) / jnp.sqrt(var + 1e-5) * gamma + beta

    assert out.shape == (batch, clip_extra_context_tokens, cross_attention_dim)
    assert jnp.allclose(out, ref, atol=2e-3, rtol=2e-3), float(
        jnp.max(jnp.abs(out - ref)))

    print("KERNEL_OK")
</pallas_src>

<mosaic_0001>
module attributes {stable_mosaic.version = 11 : i64} {
  func.func @_proj_layernorm_kernel(%arg0: i32, %arg1: memref<2x128xf32, #tpu.memory_space<vmem>>, %arg2: memref<1x128x128xbf16, #tpu.memory_space<vmem>>, %arg3: memref<1x1x128xf32, #tpu.memory_space<vmem>>, %arg4: memref<1x128xf32, #tpu.memory_space<vmem>>, %arg5: memref<1x128xf32, #tpu.memory_space<vmem>>, %arg6: memref<2x128xf32, #tpu.memory_space<vmem>>) attributes {dimension_semantics = [#tpu.dimension_semantics<parallel>], iteration_bounds = array<i64: 4>, scalar_prefetch = 0 : i64, scratch_operands = 0 : i64, tpu.core_type = #tpu.core_type<tc>, window_params = [{pipeline_mode = #tpu.pipeline_mode<synchronous>, transform_indices = @transform_0, window_bounds = array<i64: 2, 128>}, {transform_indices = @transform_1, window_bounds = array<i64: 1, 128, 128>}, {transform_indices = @transform_2, window_bounds = array<i64: 1, 1, 128>}, {pipeline_mode = #tpu.pipeline_mode<synchronous>, transform_indices = @transform_3, window_bounds = array<i64: 1, 128>}, {pipeline_mode = #tpu.pipeline_mode<synchronous>, transform_indices = @transform_4, window_bounds = array<i64: 1, 128>}, {transform_indices = @transform_5, window_bounds = array<i64: 2, 128>}]} {
    %c0 = arith.constant 0 : index
    %c0_0 = arith.constant 0 : index
    %0 = vector.load %arg1[%c0, %c0_0] : memref<2x128xf32, #tpu.memory_space<vmem>>, vector<2x128xf32>
    %1 = arith.truncf %0 : vector<2x128xf32> to vector<2x128xbf16>
    %c0_1 = arith.constant 0 : index
    %c0_2 = arith.constant 0 : index
    %2 = vector.load %arg4[%c0_1, %c0_2] : memref<1x128xf32, #tpu.memory_space<vmem>>, vector<1x128xf32>
    %c0_3 = arith.constant 0 : index
    %c0_4 = arith.constant 0 : index
    %3 = vector.load %arg5[%c0_3, %c0_4] : memref<1x128xf32, #tpu.memory_space<vmem>>, vector<1x128xf32>
    %c0_5 = arith.constant 0 : index
    %c0_6 = arith.constant 0 : index
    %c0_7 = arith.constant 0 : index
    %4 = vector.load %arg2[%c0_5, %c0_6, %c0_7] : memref<1x128x128xbf16, #tpu.memory_space<vmem>>, vector<1x128x128xbf16>
    %5 = vector.shape_cast %4 : vector<1x128x128xbf16> to vector<128x128xbf16>
    %cst = arith.constant dense<0.000000e+00> : vector<2x128xf32>
    %6 = tpu.matmul %1, %5, %cst {dimension_numbers = #tpu.dot_dimension_numbers<[1], [0], [0], [1], [0, 0, 1, 1], [], []>} : vector<2x128xbf16>, vector<128x128xbf16>, vector<2x128xf32> -> vector<2x128xf32>
    %c0_8 = arith.constant 0 : index
    %c0_9 = arith.constant 0 : index
    %c0_10 = arith.constant 0 : index
    %7 = vector.load %arg3[%c0_8, %c0_9, %c0_10] : memref<1x1x128xf32, #tpu.memory_space<vmem>>, vector<1x1x128xf32>
    %8 = vector.shape_cast %7 : vector<1x1x128xf32> to vector<1x128xf32>
    %9 = vector.broadcast %8 : vector<1x128xf32> to vector<2x128xf32>
    %10 = arith.addf %6, %9 : vector<2x128xf32>
    %cst_11 = arith.constant dense<0.000000e+00> : vector<2xf32>
    %11 = vector.multi_reduction <add>, %10, %cst_11 [1] : vector<2x128xf32> to vector<2xf32>
    %12 = vector.shape_cast %11 : vector<2xf32> to vector<2x1xf32>
    %cst_12 = arith.constant 7.812500e-03 : f32
    %13 = vector.broadcast %cst_12 : f32 to vector<2x1xf32>
    %14 = arith.mulf %12, %13 : vector<2x1xf32>
    %15 = vector.broadcast %14 : vector<2x1xf32> to vector<2x128xf32>
    %16 = arith.subf %10, %15 : vector<2x128xf32>
    %17 = arith.mulf %16, %16 : vector<2x128xf32>
    %cst_13 = arith.constant dense<0.000000e+00> : vector<2xf32>
    %18 = vector.multi_reduction <add>, %17, %cst_13 [1] : vector<2x128xf32> to vector<2xf32>
    %19 = vector.shape_cast %18 : vector<2xf32> to vector<2x1xf32>
    %cst_14 = arith.constant 7.812500e-03 : f32
    %20 = vector.broadcast %cst_14 : f32 to vector<2x1xf32>
    %21 = arith.mulf %19, %20 : vector<2x1xf32>
    %cst_15 = arith.constant 9.99999974E-6 : f32
    %22 = vector.broadcast %cst_15 : f32 to vector<2x1xf32>
    %23 = arith.addf %21, %22 : vector<2x1xf32>
    %24 = math.rsqrt %23 : vector<2x1xf32>
    %25 = vector.broadcast %24 : vector<2x1xf32> to vector<2x128xf32>
    %26 = arith.mulf %16, %25 : vector<2x128xf32>
    %27 = vector.broadcast %2 : vector<1x128xf32> to vector<2x128xf32>
    %28 = arith.mulf %26, %27 : vector<2x128xf32>
    %29 = vector.broadcast %3 : vector<1x128xf32> to vector<2x128xf32>
    %30 = arith.addf %28, %29 : vector<2x128xf32>
    %c0_16 = arith.constant 0 : index
    %c0_17 = arith.constant 0 : index
    %31 = vector.load %arg6[%c0_16, %c0_17] : memref<2x128xf32, #tpu.memory_space<vmem>>, vector<2x128xf32>
    tpu.vector_store %arg6[%c0_16, %c0_17], %30 {strides = array<i32>} : memref<2x128xf32, #tpu.memory_space<vmem>>, vector<2x128xf32>,
    return
  }
  func.func @transform_0(%arg0: i32) -> (i32, i32) {
    %c0_i32 = arith.constant 0 : i32
    %c0_i32_0 = arith.constant 0 : i32
    %c0_i32_1 = arith.constant 0 : i32
    return %c0_i32, %c0_i32_0 : i32, i32
  }
  func.func @transform_1(%arg0: i32) -> (i32, i32, i32) {
    %c0_i32 = arith.constant 0 : i32
    %c0_i32_0 = arith.constant 0 : i32
    %c0_i32_1 = arith.constant 0 : i32
    return %arg0, %c0_i32, %c0_i32_0 : i32, i32, i32
  }
  func.func @transform_2(%arg0: i32) -> (i32, i32, i32) {
    %c0_i32 = arith.constant 0 : i32
    %c0_i32_0 = arith.constant 0 : i32
    %c0_i32_1 = arith.constant 0 : i32
    return %arg0, %c0_i32, %c0_i32_0 : i32, i32, i32
  }
  func.func @transform_3(%arg0: i32) -> (i32, i32) {
    %c0_i32 = arith.constant 0 : i32
    %c0_i32_0 = arith.constant 0 : i32
    %c0_i32_1 = arith.constant 0 : i32
    return %c0_i32, %c0_i32_0 : i32, i32
  }
  func.func @transform_4(%arg0: i32) -> (i32, i32) {
    %c0_i32 = arith.constant 0 : i32
    %c0_i32_0 = arith.constant 0 : i32
    %c0_i32_1 = arith.constant 0 : i32
    return %c0_i32, %c0_i32_0 : i32, i32
  }
  func.func @transform_5(%arg0: i32) -> (i32, i32) {
    %c0_i32 = arith.constant 0 : i32
    %c0_i32_0 = arith.constant 0 : i32
    return %c0_i32, %arg0 : i32, i32
  }
}

</mosaic_0001>

<llo_original>
// kernel: projection_model.1
$region0: #{projection_model.1}
  #allocation0 [shape = 'u32[]', space=smem, size = 0x4, offset = 0x4, fixed_abs, tag = 'smem constant byte address 0x4 - core index']
  #allocation1 [shape = 'u32[144,128]{1,0:T(1,128)}', space=vmem, size = 0x12000, scoped, tag = 'internal scratch']
  %s0 = inlined_call_operand.hbm [shape: f32[2,128], index: 0, kind: input, shape index: {}]
  %s1 = inlined_call_operand.hbm [shape: bf16[4,128,128], index: 1, kind: input, shape index: {}]
  %s2 = inlined_call_operand.vmem [shape: f32[4,1,128], index: 2, kind: input, shape index: {}]
  %s3 = inlined_call_operand.vmem [shape: f32[1,128], index: 3, kind: input, shape index: {}]
  %s4 = inlined_call_operand.vmem [shape: f32[1,128], index: 4, kind: input, shape index: {}]
  %s5 = inlined_call_operand.vmem [shape: f32[2,512], index: 5, kind: output, shape index: {}]
  %s6 = sld [smem:[#allocation0]]
  $region61: #{projection_model.1} parent=0
    _
  %s8 = ssub.s32 1, %s6
  %s9 = scalar_select 0, %s8, %s6
  $region1: #{projection_model.1} parent=0
    #allocation2 [shape = 'u8[1024]{0}', space=vmem, size = 0x400, scoped, tag = 'input window, operand 0, single buffered']
    #allocation3 [shape = 's32[2]{0}', space=sflag, size = 0x8, scoped, tag = 'scoped memory for projection_model.1']
    #allocation4 [shape = 'u8[65536]{0}', space=vmem, size = 0x10000, scoped, tag = 'input window, operand 1']
    #allocation5 [shape = 's32[2]{0}', space=sflag, size = 0x8, scoped, tag = 'scoped memory for projection_model.1']
    %10 = vsyncpa [#allocation3], 0
    %11 = vsyncpa [#allocation5], 0
    %s12 = scalar_lea.sflag [#allocation5], 1
    %13 = vsyncpa %s12, 0
    loop: start=0, step=1, limit=6
    $region2: #{projection_model.1} parent=1 // loop_pre_header
      _
    $region3: #{projection_model.1} parent=1 // loop_header
      %s15 = sphi 0, %s19
      %p16 = scmp.ge.s32.totalorder %s15, 6
      %s23 = sphi 0, %s23
      %s25 = sphi 0, %s23
      %s26 = sphi 0, %s25
      %s40 = sphi 0, %s26
      %s46 = sphi 0, %s48
      %s49 = sphi 0, %s46
      %s50 = sphi 0, %s49
      %s66 = sphi 0, %s50
      %s72 = sphi 0, %s74
      %s75 = sphi 0, %s72
      %s76 = sphi 0, %s75
      %s92 = sphi 0, %s76
      %s96 = sphi 0, %s96
      %s98 = sphi 0, %s96
      %s99 = sphi 0, %s98
      %s113 = sphi 0, %s99
      %s117 = sphi 0, %s117
      %s119 = sphi 0, %s117
      %s120 = sphi 0, %s119
      %s134 = sphi 0, %s120
      %s140 = sphi 0, %s142
      %s143 = sphi 0, %s140
      %s144 = sphi 0, %s143
      %s160 = sphi 0, %s144
    $region4: #{projection_model.1} parent=1 // loop_header_branch
      %18 = sbr.rel (%p16) target = $region8
    $region5: #{projection_model.1} parent=1 // loop_body
      %s20 = ssub.s32 %s15, 1
      %s21 = ssub.s32 %s15, 2
      %s22 = sadd.s32 %s15, 1
      %s24 = sadd.s32 %s23, 1
      %p27 = scmp.eq.s32.totalorder %s15, 3
      %p28 = scmp.ne.s32.totalorder %s23, %s25
      %p29 = scmp.eq.s32.totalorder %s15, 0
      %p30 = por %p28, %p29
      %p31 = scmp.ne.s32.totalorder %s23, %s25
      %p32 = scmp.eq.s32.totalorder %s20, 3
      %p33 = por %p31, %p32
      %p34 = scmp.ne.s32.totalorder %s25, %s26
      %p35 = scmp.eq.s32.totalorder %s20, 0
      %p36 = por %p34, %p35
      %p37 = scmp.ne.s32.totalorder %s25, %s26
      %p38 = scmp.eq.s32.totalorder %s21, 3
      %p39 = por %p37, %p38
      %p41 = scmp.ne.s32.totalorder %s26, %s40
      %p42 = scmp.eq.s32.totalorder %s21, 0
      %p43 = por %p41, %p42
      %s44 = ssub.s32 %s15, %s22
      %p45 = scmp.eq.s32.totalorder %s44, 0
      %s47 = sadd.s32 %s46, 1
      %s48 = scalar_select %p45, %s46, %s47
      %p51 = pneg %p45
      %p52 = scmp.eq.s32.totalorder %s15, 3
      %p53 = por %p51, %p52
      %p54 = scmp.ne.s32.totalorder %s46, %s49
      %p55 = scmp.eq.s32.totalorder %s15, 0
      %p56 = por %p54, %p55
      %p57 = scmp.ne.s32.totalorder %s46, %s49
      %p58 = scmp.eq.s32.totalorder %s20, 3
      %p59 = por %p57, %p58
      %p60 = scmp.ne.s32.totalorder %s49, %s50
      %p61 = scmp.eq.s32.totalorder %s20, 0
      %p62 = por %p60, %p61
      %p63 = scmp.ne.s32.totalorder %s49, %s50
      %p64 = scmp.eq.s32.totalorder %s21, 3
      %p65 = por %p63, %p64
      %p67 = scmp.ne.s32.totalorder %s50, %s66
      %p68 = scmp.eq.s32.totalorder %s21, 0
      %p69 = por %p67, %p68
      %s70 = ssub.s32 %s15, %s22
      %p71 = scmp.eq.s32.totalorder %s70, 0
      %s73 = sadd.s32 %s72, 1
      %s74 = scalar_select %p71, %s72, %s73
      %p77 = pneg %p71
      %p78 = scmp.eq.s32.totalorder %s15, 3
      %p79 = por %p77, %p78
      %p80 = scmp.ne.s32.totalorder %s72, %s75
      %p81 = scmp.eq.s32.totalorder %s15, 0
      %p82 = por %p80, %p81
      %p83 = scmp.ne.s32.totalorder %s72, %s75
      %p84 = scmp.eq.s32.totalorder %s20, 3
      %p85 = por %p83, %p84
      %p86 = scmp.ne.s32.totalorder %s75, %s76
      %p87 = scmp.eq.s32.totalorder %s20, 0
      %p88 = por %p86, %p87
      %p89 = scmp.ne.s32.totalorder %s75, %s76
      %p90 = scmp.eq.s32.totalorder %s21, 3
      %p91 = por %p89, %p90
      %p93 = scmp.ne.s32.totalorder %s76, %s92
      %p94 = scmp.eq.s32.totalorder %s21, 0
      %p95 = por %p93, %p94
      %s97 = sadd.s32 %s96, 1
      %p100 = scmp.eq.s32.totalorder %s15, 3
      %p101 = scmp.ne.s32.totalorder %s96, %s98
      %p102 = scmp.eq.s32.totalorder %s15, 0
      %p103 = por %p101, %p102
      %p104 = scmp.ne.s32.totalorder %s96, %s98
      %p105 = scmp.eq.s32.totalorder %s20, 3
      %p106 = por %p104, %p105
      %p107 = scmp.ne.s32.totalorder %s98, %s99
      %p108 = scmp.eq.s32.totalorder %s20, 0
      %p109 = por %p107, %p108
      %p110 = scmp.ne.s32.totalorder %s98, %s99
      %p111 = scmp.eq.s32.totalorder %s21, 3
      %p112 = por %p110, %p111
      %p114 = scmp.ne.s32.totalorder %s99, %s113
      %p115 = scmp.eq.s32.totalorder %s21, 0
      %p116 = por %p114, %p115
      %s118 = sadd.s32 %s117, 1
      %p121 = scmp.eq.s32.totalorder %s15, 3
      %p122 = scmp.ne.s32.totalorder %s117, %s119
      %p123 = scmp.eq.s32.totalorder %s15, 0
      %p124 = por %p122, %p123
      %p125 = scmp.ne.s32.totalorder %s117, %s119
      %p126 = scmp.eq.s32.totalorder %s20, 3
      %p127 = por %p125, %p126
      %p128 = scmp.ne.s32.totalorder %s119, %s120
      %p129 = scmp.eq.s32.totalorder %s20, 0
      %p130 = por %p128, %p129
      %p131 = scmp.ne.s32.totalorder %s119, %s120
      %p132 = scmp.eq.s32.totalorder %s21, 3
      %p133 = por %p131, %p132
      %p135 = scmp.ne.s32.totalorder %s120, %s134
      %p136 = scmp.eq.s32.totalorder %s21, 0
      %p137 = por %p135, %p136
      %s138 = ssub.s32 %s15, %s22
      %p139 = scmp.eq.s32.totalorder %s138, 0
      %s141 = sadd.s32 %s140, 1
      %s142 = scalar_select %p139, %s140, %s141
      %p145 = pneg %p139
      %p146 = scmp.eq.s32.totalorder %s15, 3
      %p147 = por %p145, %p146
      %p148 = scmp.ne.s32.totalorder %s140, %s143
      %p149 = scmp.eq.s32.totalorder %s15, 0
      %p150 = por %p148, %p149
      %p151 = scmp.ne.s32.totalorder %s140, %s143
      %p152 = scmp.eq.s32.totalorder %s20, 3
      %p153 = por %p151, %p152
      %p154 = scmp.ne.s32.totalorder %s143, %s144
      %p155 = scmp.eq.s32.totalorder %s20, 0
      %p156 = por %p154, %p155
      %p157 = scmp.ne.s32.totalorder %s143, %s144
      %p158 = scmp.eq.s32.totalorder %s21, 3
      %p159 = por %p157, %p158
      %p161 = scmp.ne.s32.totalorder %s144, %s160
      %p162 = scmp.eq.s32.totalorder %s21, 0
      %p163 = por %p161, %p162
      %p164 = scmp.le.s32.totalorder 1, %s15
      %p165 = scmp.lt.s32.totalorder %s15, 5
      %p166 = pnand %p164, %p165
      %p167 = pneg %p166
      // Predicated region
      $region9: #{projection_model.1} parent=5 // pred_check
        _
      $region10: #{projection_model.1} parent=5 // pred_check_branch
        %169 = sbr.rel (%p166) target = $region12
      $region11: #{projection_model.1} parent=5 // pred_region
        %s170 = ssub.s32 %s15, 1
        // Predicated region
        $region13: #{projection_model.1} parent=11 // pred_check
          %p171 = pneg %p36
        $region14: #{projection_model.1} parent=11 // pred_check_branch
          %173 = sbr.rel (%p171) target = $region16
        $region15: #{projection_model.1} parent=11 // pred_region
          %s175 = ssub.s32 32, 32
          %176 = vsyncadd [#allocation3], %s175
          %s178 = sshll.u32 [#allocation2], 4
          %s179 = int_to_ptr.vmem [resolvable:$true] %s178
          %181 = dma.hbm_to_vmem [thread:$0]  %s0, 32, %s179, [#allocation3]
        $region16: #{projection_model.1} parent=11 // pred_fallthru
          _
        // Predicated region
        $region17: #{projection_model.1} parent=11 // pred_check
          %p182 = pneg %p109
        $region18: #{projection_model.1} parent=11 // pred_check_branch
          %184 = sbr.rel (%p182) target = $region20
        $region19: #{projection_model.1} parent=11 // pred_region
          _
        $region20: #{projection_model.1} parent=11 // pred_fallthru
          _
        // Predicated region
        $region21: #{projection_model.1} parent=11 // pred_check
          %p185 = pneg %p130
        $region22: #{projection_model.1} parent=11 // pred_check_branch
          %187 = sbr.rel (%p185) target = $region24
        $region23: #{projection_model.1} parent=11 // pred_region
          _
        $region24: #{projection_model.1} parent=11 // pred_fallthru
          _
      $region12: #{projection_model.1} parent=5 // pred_fallthru
        _
      %p188 = scmp.lt.s32.totalorder %s15, 4
      // Predicated region
      $region25: #{projection_model.1} parent=5 // pred_check
        %p189 = pneg %p188
      $region26: #{projection_model.1} parent=5 // pred_check_branch
        %191 = sbr.rel (%p189) target = $region28
      $region27: #{projection_model.1} parent=5 // pred_region
        // Predicated region
        $region29: #{projection_model.1} parent=27 // pred_check
          %p192 = pneg %p56
        $region30: #{projection_model.1} parent=27 // pred_check_branch
          %194 = sbr.rel (%p192) target = $region32
        $region31: #{projection_model.1} parent=27 // pred_region
          %s195 = sand.u32 %s46, 1
          %s196 = scalar_lea.sflag [#allocation5], %s195
          %s197 = sand.u32 %s46, 1
          %s198 = smul.addr %s197, 64
          %s199 = scalar_lea.vmem [#allocation4], %s198
          %s201 = ssub.s32 1024, 1024
          %202 = vsyncadd %s196, %s201
          %s203 = smul.addr %s15, 16
          %s204 = smul.addr %s203, 64
          %s205 = scalar_lea.hbm %s1, %s204
          %s206 = sshll.u32 %s199, 4
          %s207 = int_to_ptr.vmem [resolvable:$true] %s206
          %212 = dma.hbm_to_vmem [thread:$0]  %s205, 1024, %s207, %s196, 64, 64, 4
        $region32: #{projection_model.1} parent=27 // pred_fallthru
          _
        // Predicated region
        $region33: #{projection_model.1} parent=27 // pred_check
          %p213 = pneg %p82
        $region34: #{projection_model.1} parent=27 // pred_check_branch
          %215 = sbr.rel (%p213) target = $region36
        $region35: #{projection_model.1} parent=27 // pred_region
          %p216 = scmp.lt.s32.totalorder %s15, 3
          %s217 = scalar_select %p216, %s15, 3
          %s218 = scalar_lea.vmem %s2, %s217
        $region36: #{projection_model.1} parent=27 // pred_fallthru
          _
      $region28: #{projection_model.1} parent=5 // pred_fallthru
        _
      %p219 = scmp.le.s32.totalorder 1, %s15
      %p220 = scmp.lt.s32.totalorder %s15, 5
      %p221 = pnand %p219, %p220
      %p222 = pneg %p221
      // Predicated region
      $region37: #{projection_model.1} parent=5 // pred_check
        _
      $region38: #{projection_model.1} parent=5 // pred_check_branch
        %224 = sbr.rel (%p221) target = $region40
      $region39: #{projection_model.1} parent=5 // pred_region
        %s225 = ssub.s32 %s15, 1
        // Predicated region
        $region41: #{projection_model.1} parent=39 // pred_check
          %p226 = pneg %p36
        $region42: #{projection_model.1} parent=39 // pred_check_branch
          %228 = sbr.rel (%p226) target = $region44
        $region43: #{projection_model.1} parent=39 // pred_region
          %229 = dma.done [#allocation3], 32
        $region44: #{projection_model.1} parent=39 // pred_fallthru
          _
        %s230 = sand.u32 %s49, 1
        %s231 = scalar_lea.sflag [#allocation5], %s230
        %s232 = sand.u32 %s49, 1
        %s233 = smul.addr %s232, 64
        %s234 = scalar_lea.vmem [#allocation4], %s233
        // Predicated region
        $region45: #{projection_model.1} parent=39 // pred_check
          %p235 = pneg %p62
        $region46: #{projection_model.1} parent=39 // pred_check_branch
          %237 = sbr.rel (%p235) target = $region48
        $region47: #{projection_model.1} parent=39 // pred_region
          %238 = dma.done %s231, 1024
        $region48: #{projection_model.1} parent=39 // pred_fallthru
          _
        %p239 = pneg %p36
        %p240 = pneg %p33
        %s241 = sand.u32 %s49, 1
        %s242 = scalar_lea.sflag [#allocation5], %s241
        %s243 = sand.u32 %s49, 1
        %s244 = smul.addr %s243, 64
        %s245 = scalar_lea.vmem [#allocation4], %s244
        %p246 = pneg %p62
        %p247 = pneg %p59
        %p248 = scmp.lt.s32.totalorder %s20, 3
        %s249 = scalar_select %p248, %s20, 3
        %s250 = scalar_lea.vmem %s2, %s249
        %p251 = pneg %p88
        %p252 = pneg %p85
        %p253 = pneg %p109
        %p254 = pneg %p106
        %p255 = pneg %p130
        %p256 = pneg %p127
        %p257 = pneg %p156
        %p258 = pneg %p153
        %p259 = scmp.lt.s32.totalorder %s20, 3
        %s260 = scalar_select %p259, %s20, 3
        %s261 = smul.addr %s260, 2
        %s262 = scalar_lea.vmem %s5, %s261
        %p263 = scmp.lt.s32.totalorder %s20, 3
        %s264 = scalar_select %p263, %s20, 3
        %s265 = scalar_lea.vmem %s2, %s264
        %p266 = scmp.lt.s32.totalorder %s20, 3
        %s267 = scalar_select %p266, %s20, 3
        %s268 = smul.addr %s267, 2
        %s269 = scalar_lea.vmem %s5, %s268
        %v271 = vld [vmem:[#allocation2] sm:$0x3]
        %v272 = vpack.c.bf16 %v271, %v271
        %v273 = vld [vmem:[%s3] sm:$0x1]
        %v274 = vld [vmem:[%s4] sm:$0x1]
        %v275 = vld [vmem:[%s234] sm:$0xf]
        %v276 = vld [vmem:[%s234 + $0x4] sm:$0xf]
        %v277 = vld [vmem:[%s234 + $0x8] sm:$0xf]
        %v278 = vld [vmem:[%s234 + $0xc] sm:$0xf]
        %v279 = vld [vmem:[%s234 + $0x10] sm:$0xf]
        %v280 = vld [vmem:[%s234 + $0x14] sm:$0xf]
        %v281 = vld [vmem:[%s234 + $0x18] sm:$0xf]
        %v282 = vld [vmem:[%s234 + $0x1c] sm:$0xf]
        %v283 = vld [vmem:[%s234 + $0x20] sm:$0xf]
        %v284 = vld [vmem:[%s234 + $0x24] sm:$0xf]
        %v285 = vld [vmem:[%s234 + $0x28] sm:$0xf]
        %v286 = vld [vmem:[%s234 + $0x2c] sm:$0xf]
        %v287 = vld [vmem:[%s234 + $0x30] sm:$0xf]
        %v288 = vld [vmem:[%s234 + $0x34] sm:$0xf]
        %v289 = vld [vmem:[%s234 + $0x38] sm:$0xf]
        %v290 = vld [vmem:[%s234 + $0x3c] sm:$0xf]
        %v291 = vld [vmem:[%s265] sm:$0x1]
        %v293 = vlaneseq
        %v294 = vshrl.u32 %v293, 7
        %v295 = vsub.s32 0, %v294
        %v296 = vrot.slane %v291, %v295
        %v314 = vunpack.c.l.b16 %v275
        %v315 = vunpack.c.l.b16 %v276
        %v316 = vunpack.c.l.b16 %v277
        %v317 = vunpack.c.l.b16 %v278
        %v318 = vunpack.c.l.b16 %v279
        %v319 = vunpack.c.l.b16 %v280
        %v320 = vunpack.c.l.b16 %v281
        %v321 = vunpack.c.l.b16 %v282
        %v322 = vunpack.c.l.b16 %v283
        %v323 = vunpack.c.l.b16 %v284
        %v324 = vunpack.c.l.b16 %v285
        %v325 = vunpack.c.l.b16 %v286
        %v326 = vunpack.c.l.b16 %v287
        %v327 = vunpack.c.l.b16 %v288
        %v328 = vunpack.c.l.b16 %v289
        %v329 = vunpack.c.l.b16 %v290
        %v330 = vpack.c.b16 %v315, %v314
        %v331 = vpack.c.b16 %v317, %v316
        %v332 = vpack.c.b16 %v319, %v318
        %v333 = vpack.c.b16 %v321, %v320
        %v334 = vpack.c.b16 %v323, %v322
        %v335 = vpack.c.b16 %v325, %v324
        %v336 = vpack.c.b16 %v327, %v326
        %v337 = vpack.c.b16 %v329, %v328
        %346 = vmatprep.subr.bf16.mxu0 0
        %347 = vmatpush1.bf16.msra.mxu0 %v330
        %348 = vmatprep.subr.bf16.mxu0 0
        %349 = vmatpush1.bf16.msra.mxu0 %v331
        %350 = vmatprep.subr.bf16.mxu0 0
        %351 = vmatpush1.bf16.msra.mxu0 %v332
        %352 = vmatprep.subr.bf16.mxu0 0
        %353 = vmatpush1.bf16.msra.mxu0 %v333
        %354 = vmatprep.subr.bf16.mxu0 0
        %355 = vmatpush1.bf16.msra.mxu0 %v334
        %356 = vmatprep.subr.bf16.mxu0 0
        %357 = vmatpush1.bf16.msra.mxu0 %v335
        %358 = vmatprep.subr.bf16.mxu0 0
        %359 = vmatpush1.bf16.msra.mxu0 %v336
        %360 = vmatprep.subr.bf16.mxu0 0
        %361 = vmatpush1.bf16.msra.mxu0 %v337
        %362 = vmatprep.subr.bf16.mxu0 0
        %363 = vmatpush1.bf16.msra.mxu0 0
        %364 = vmatprep.subr.bf16.mxu0 0
        %365 = vmatpush1.bf16.msra.mxu0 0
        %366 = vmatprep.subr.bf16.mxu0 0
        %367 = vmatpush1.bf16.msra.mxu0 0
        %368 = vmatprep.subr.bf16.mxu0 0
        %369 = vmatpush1.bf16.msra.mxu0 0
        %370 = vmatprep.subr.bf16.mxu0 0
        %371 = vmatpush1.bf16.msra.mxu0 0
        %372 = vmatprep.subr.bf16.mxu0 0
        %373 = vmatpush1.bf16.msra.mxu0 0
        %374 = vmatprep.subr.bf16.mxu0 0
        %375 = vmatpush1.bf16.msra.mxu0 0
        %376 = vmatprep.subr.bf16.mxu0 0
        %377 = vmatpush1.bf16.msra.mxu0 0
        %378 = vmatprep.mubr.bf16.mxu0 0
        %379 = vmatmul.mubr.bf16.gmra.mrb[0].mxu0 %v272
        %v380 = vpop.f32.mrb[0].mxu0
        %v381 = vadd.f32 %v296, %v380
        %v382 = vpop.f32.mrb[0].mxu0
        %v383 = vpop.f32.mrb[0].mxu0
        %v384 = vpop.f32.mrb[0].mxu0
        %385 = vdwg.mxu0
        %vm386 = vcmask 1041408
        %v387 = vsel %vm386, %v381, 0.0
        %388 = vadd.xlane.f32.xlu0 %v387
        %v389 = vpop.xlane.xlu0 %388
        %v390 = vmul.f32 %v389, 0.0078125
        %v391 = vsub.f32 %v381, %v390
        %v392 = vmul.f32 %v391, %v391
        %v393 = vsel %vm386, %v392, 0.0
        %394 = vadd.xlane.f32.xlu0 %v393
        %v395 = vpop.xlane.xlu0 %394
        %v396 = vmul.f32 %v395, 0.0078125
        %v397 = vadd.f32 %v396, 1e-05
        %v398 = vrsqrt.pop %v397
        %v399 = vmul.f32 %v391, %v398
        %v401 = vlaneseq
        %v402 = vshrl.u32 %v401, 7
        %v403 = vsub.s32 0, %v402
        %v404 = vrot.slane %v273, %v403
        %v406 = vmul.f32 %v399, %v404
        %v408 = vlaneseq
        %v409 = vshrl.u32 %v408, 7
        %v410 = vsub.s32 0, %v409
        %v411 = vrot.slane %v274, %v410
        %v413 = vadd.f32 %v406, %v411
        %414 = vst [vmem:[%s269] sm:$0x3] %v413
        %p415 = scmp.lt.s32.totalorder %s20, 3
        %s416 = scalar_select %p415, %s20, 3
        %s417 = smul.addr %s416, 2
        %s418 = scalar_lea.vmem %s5, %s417
        // Predicated region
        $region49: #{projection_model.1} parent=39 // pred_check
          %p419 = pneg %p153
        $region50: #{projection_model.1} parent=39 // pred_check_branch
          %421 = sbr.rel (%p419) target = $region52
        $region51: #{projection_model.1} parent=39 // pred_region
          _
        $region52: #{projection_model.1} parent=39 // pred_fallthru
          _
      $region40: #{projection_model.1} parent=5 // pred_fallthru
        _
      %p422 = scmp.le.s32.totalorder 2, %s15
      // Predicated region
      $region53: #{projection_model.1} parent=5 // pred_check
        %p423 = pneg %p422
      $region54: #{projection_model.1} parent=5 // pred_check_branch
        %425 = sbr.rel (%p423) target = $region56
      $region55: #{projection_model.1} parent=5 // pred_region
        %s426 = ssub.s32 %s15, 2
        // Predicated region
        $region57: #{projection_model.1} parent=55 // pred_check
          %p427 = pneg %p159
        $region58: #{projection_model.1} parent=55 // pred_check_branch
          %429 = sbr.rel (%p427) target = $region60
        $region59: #{projection_model.1} parent=55 // pred_region
          %p430 = scmp.lt.s32.totalorder %s21, 3
          %s431 = scalar_select %p430, %s21, 3
          %s432 = smul.addr %s431, 2
          %s433 = scalar_lea.vmem %s5, %s432
        $region60: #{projection_model.1} parent=55 // pred_fallthru
          _
      $region56: #{projection_model.1} parent=5 // pred_fallthru
        _
    $region6: #{projection_model.1} parent=1 // loop_footer
      %s19 = sadd.s32 1, %s15
    $region7: #{projection_model.1} parent=1 // loop_footer_branch
      %14 = sbr.rel target = $region3
    $region8: #{projection_model.1} parent=1 // loop_exit
      _
    %434 = vsyncpa [#allocation3], 1
    %s435 = scalar_lea.sflag [#allocation3], 1
    %436 = vsyncpa %s435, 1
    %437 = vsyncpa [#allocation5], 1
    %s438 = scalar_lea.sflag [#allocation5], 1
    %439 = vsyncpa %s438, 1

</llo_original>
